<compile_context>
chip_gen: v5e
topology: v5e:2x2
jax: 0.10.0
libtpu: 0.0.40
codegen_flags: <defaults>
</compile_context>

<pallas_src>
import functools

import jax
import jax.numpy as jnp
from jax import lax
from jax.experimental import pallas as pl
from jax.experimental.pallas import tpu as pltpu


def _round_up(x, m):
    return ((x + m - 1) // m) * m


def _cdiv(a, b):
    return -(-a // b)


def aggr_sum_kernel(x_ref, h_ref, o_ref, acc_ref, *, tv_inner, chunks_per_block,
                    compute_dtype):
    """One grid step: accumulate mask(tile) @ H(tile) into the resident f32 acc.

    x_ref  : (1, tN)   int32 node id of each H row in this N tile (-1 on pad rows)
    h_ref  : (tN, tD)  H tile
    o_ref  : (tVb, tD) output block, tVb = chunks_per_block * tv_inner
    acc_ref: (tVb, tD) f32 accumulator, resident across the N (last, "arbitrary") axis
    """
    k = pl.program_id(2)

    @pl.when(k == 0)
    def _init():
        acc_ref[...] = jnp.zeros_like(acc_ref)

    h = h_ref[...]
    if compute_dtype is not None and h.dtype != compute_dtype:
        # Explicit reduced-precision MXU path (mask is exactly 0/1, acc stays f32).
        h = h.astype(compute_dtype)

    x_row = x_ref[...]                                     # (1, tN) int32
    tn = x_row.shape[1]
    block_v_off = pl.program_id(0) * (chunks_per_block * tv_inner)

    # Plain iota, hoisted once per grid step and reused by every V chunk.
    iota = lax.broadcasted_iota(jnp.int32, (tv_inner, tn), 0)

    def chunk(c, row_start):
        # Shift the ids instead of the iota: one (1, tN) int32 op instead of a
        # full (tv_inner, tN) add plus an explicit broadcast.
        x_local = x_row - (block_v_off + c * tv_inner)     # (1, tN) int32
        mask = (x_local == iota).astype(h.dtype)           # implicit row broadcast
        partial = jnp.dot(mask, h, preferred_element_type=jnp.float32)
        acc_ref[pl.ds(row_start, tv_inner), :] += partial

    if chunks_per_block <= 8:
        for c in range(chunks_per_block):                  # static, fully unrolled
            chunk(c, c * tv_inner)
    else:
        def body(c, carry):
            chunk(c, pl.multiple_of(c * tv_inner, tv_inner))
            return carry
        lax.fori_loop(0, chunks_per_block, body, 0)

    @pl.when(k == pl.num_programs(2) - 1)
    def _writeback():
        o_ref[...] = acc_ref[...].astype(o_ref.dtype)


def _vmem_capacity_bytes():
    """Per-TensorCore VMEM capacity; conservative 64 MiB fallback (v7x floor)."""
    try:
        cap = int(pltpu.get_tpu_info().vmem_capacity_bytes)
        if cap > 0:
            return min(cap, 128 << 20)
    except Exception:
        pass
    return 64 << 20


def _pick_tile(padded_dim, max_tile, candidates):
    """Largest lane-aligned tile <= max_tile that divides the padded dim."""
    for cand in candidates:
        if cand <= max_tile and padded_dim % cand == 0:
            return cand
    return min(padded_dim, 128)


def aggr_sum(H, X_node, node_num, *, tile_v_inner=512, tile_d_max=512,
             tile_n_max=1024, compute_dtype=None, h_buffer_count=2):
    """Scatter-sum of H rows by node id X_node (PyTorch AggrSum.forward)."""
    N, D = H.shape
    V = int(node_num)
    out_dtype = H.dtype
    h_in_bytes = jnp.dtype(H.dtype).itemsize
    o_bytes = jnp.dtype(out_dtype).itemsize
    mask_bytes = jnp.dtype(compute_dtype if compute_dtype is not None
                           else H.dtype).itemsize

    # ---- Lane/MXU-aligned tiles; divisors of the 128-padded dims (no pad waste). --
    D_pad = _round_up(D, 128)
    N_pad = _round_up(N, 128)
    tD = _pick_tile(D_pad, max(128, tile_d_max), (512, 384, 256, 128))
    tN = _pick_tile(N_pad, max(128, tile_n_max), (1024, 768, 512, 384, 256, 128))

    # ---- V blocking: one big resident block of `chunks_per_block` inner chunks. ----
    V_pad8 = _round_up(max(V, 1), 8)
    tv_inner = min(_round_up(tile_v_inner, 8), V_pad8)
    n_chunks_total = _cdiv(V_pad8, tv_inner)

    vmem_cap = _vmem_capacity_bytes()
    n_h_bufs = max(2, int(h_buffer_count))
    fixed_bytes = (n_h_bufs * tN * tD * h_in_bytes            # H input buffers
                   + 2 * 8 * tN * 4                           # X buffers (sublane pad)
                   + 2 * tv_inner * tN * (4 + mask_bytes))    # iota + mask temporaries
    per_chunk_bytes = tv_inner * tD * (4 + 2 * o_bytes)       # f32 acc + 2x out buffer
    budget = int(vmem_cap * 0.6) - fixed_bytes
    chunks_per_block = int(max(1, min(n_chunks_total, budget // per_chunk_bytes)))
    n_vblocks = _cdiv(n_chunks_total, chunks_per_block)
    n_d = D_pad // tD

    # ---- v7x megacore: ensure >= 2 parallel (V, D) blocks when the shapes allow. ----
    if n_vblocks * n_d == 1:
        if D_pad >= 256 and D_pad % 256 == 0:
            tD = D_pad // 2
            n_d = 2
        elif chunks_per_block >= 2:
            chunks_per_block = _cdiv(chunks_per_block, 2)
            n_vblocks = _cdiv(n_chunks_total, chunks_per_block)

    tVb = chunks_per_block * tv_inner
    V_pad = n_vblocks * tVb
    n_n = N_pad // tN
    grid = (n_vblocks, n_d, n_n)

    # ---- Pad inputs; padded H rows get id -1 so they never match any node. ----
    H_p = jnp.pad(H, ((0, N_pad - N), (0, D_pad - D)))
    x_p = jnp.pad(X_node.astype(jnp.int32), (0, N_pad - N),
                  constant_values=-1).reshape(1, N_pad)

    # ---- VMEM limit: honest estimate, clamped below the per-core capacity. ----
    est_bytes = (n_h_bufs * tN * tD * h_in_bytes
                 + 2 * 8 * tN * 4
                 + 2 * tVb * tD * o_bytes
                 + tVb * tD * 4
                 + 2 * tv_inner * tN * (4 + mask_bytes))
    vmem_limit = int(min(max(est_bytes * 5 // 4 + (2 << 20), 32 << 20),
                         int(vmem_cap * 0.9)))

    cost = pl.CostEstimate(
        flops=2 * V_pad * N_pad * D_pad,
        transcendentals=0,
        bytes_accessed=int(n_vblocks * N_pad * D_pad * h_in_bytes
                           + n_vblocks * n_d * N_pad * 4
                           + V_pad * D_pad * o_bytes),
    )

    h_spec_kwargs = {}
    if n_h_bufs != 2:
        h_spec_kwargs["pipeline_mode"] = pl.Buffered(n_h_bufs)

    kernel = functools.partial(
        aggr_sum_kernel,
        tv_inner=tv_inner,
        chunks_per_block=chunks_per_block,
        compute_dtype=compute_dtype,
    )

    out = pl.pallas_call(
        kernel,
        out_shape=jax.ShapeDtypeStruct((V_pad, D_pad), out_dtype),
        grid_spec=pltpu.PrefetchScalarGridSpec(
            num_scalar_prefetch=0,
            grid=grid,
            in_specs=[
                pl.BlockSpec((1, tN), lambda i, j, k: (0, k)),      # node ids
                pl.BlockSpec((tN, tD), lambda i, j, k: (k, j),      # H tile
                             **h_spec_kwargs),
            ],
            out_specs=pl.BlockSpec((tVb, tD), lambda i, j, k: (i, j)),
            scratch_shapes=[pltpu.VMEM((tVb, tD), jnp.float32)],
        ),
        compiler_params=pltpu.CompilerParams(
            dimension_semantics=("parallel", "parallel", "arbitrary"),
            vmem_limit_bytes=vmem_limit,
        ),
        cost_estimate=cost,
    )(x_p, H_p)

    return out[:V, :D]


if __name__ == "__main__":
    key = jax.random.PRNGKey(0)
    k1, k2 = jax.random.split(key)

    V = 8     # node_num
    N = 16    # rows of H (messages / edges)
    D = 32    # hidden feature dim

    H = jax.random.normal(k1, (N, D), dtype=jnp.float32)
    X_node = jax.random.randint(k2, (N,), 0, V, dtype=jnp.int32)

    out = aggr_sum(H, X_node, V)
    out = jax.block_until_ready(out)

    # Reference: one-hot scatter-sum, identical to torch.mm(mask, H).
    ref = jnp.dot(jax.nn.one_hot(X_node, V, dtype=jnp.float32).T, H)
    assert out.shape == (V, D)
    assert jnp.allclose(out, ref, atol=1e-5, rtol=1e-5)

    print("KERNEL_OK")
</pallas_src>

<mosaic_0001>
module attributes {stable_mosaic.version = 11 : i64} {
  func.func @aggr_sum_kernel(%arg0: i32, %arg1: i32, %arg2: i32, %arg3: memref<1x128xi32, #tpu.memory_space<vmem>>, %arg4: memref<128x128xf32, #tpu.memory_space<vmem>>, %arg5: memref<8x128xf32, #tpu.memory_space<vmem>>, %arg6: memref<8x128xf32, #tpu.memory_space<vmem>>) attributes {dimension_semantics = [#tpu.dimension_semantics<parallel>, #tpu.dimension_semantics<parallel>, #tpu.dimension_semantics<arbitrary>], iteration_bounds = array<i64: 1, 1, 1>, scalar_prefetch = 0 : i64, scratch_operands = 1 : i64, tpu.core_type = #tpu.core_type<tc>, window_params = [{transform_indices = @transform_0, window_bounds = array<i64: 1, 128>}, {transform_indices = @transform_1, window_bounds = array<i64: 128, 128>}, {transform_indices = @transform_2, window_bounds = array<i64: 8, 128>}]} {
    %c0_i32 = arith.constant 0 : i32
    %0 = arith.cmpi eq, %arg2, %c0_i32 : i32
    %1 = arith.extui %0 : i1 to i32
    %c0_i32_0 = arith.constant 0 : i32
    %2 = arith.cmpi ne, %1, %c0_i32_0 : i32
    scf.if %2 {
      %cst_11 = arith.constant 0.000000e+00 : f32
      %21 = vector.broadcast %cst_11 : f32 to vector<8x128xf32>
      %c0_12 = arith.constant 0 : index
      %c0_13 = arith.constant 0 : index
      %22 = vector.load %arg6[%c0_12, %c0_13] : memref<8x128xf32, #tpu.memory_space<vmem>>, vector<8x128xf32>
      tpu.vector_store %arg6[%c0_12, %c0_13], %21 {strides = array<i32>} : memref<8x128xf32, #tpu.memory_space<vmem>>, vector<8x128xf32>,
    } else {
    }
    %c0 = arith.constant 0 : index
    %c0_1 = arith.constant 0 : index
    %3 = vector.load %arg4[%c0, %c0_1] : memref<128x128xf32, #tpu.memory_space<vmem>>, vector<128x128xf32>
    %c0_2 = arith.constant 0 : index
    %c0_3 = arith.constant 0 : index
    %4 = vector.load %arg3[%c0_2, %c0_3] : memref<1x128xi32, #tpu.memory_space<vmem>>, vector<1x128xi32>
    %c8_i32 = arith.constant 8 : i32
    %5 = arith.muli %arg0, %c8_i32 : i32
    %6 = tpu.iota {dimensions = array<i32: 0>} : vector<8x128xi32>
    %c0_i32_4 = arith.constant 0 : i32
    %7 = arith.addi %5, %c0_i32_4 : i32
    %8 = vector.broadcast %7 : i32 to vector<1x128xi32>
    %9 = arith.subi %4, %8 : vector<1x128xi32>
    %10 = vector.broadcast %9 : vector<1x128xi32> to vector<8x128xi32>
    %11 = arith.cmpi eq, %10, %6 : vector<8x128xi32>
    %12 = arith.extui %11 : vector<8x128xi1> to vector<8x128xi32>
    %13 = arith.sitofp %12 : vector<8x128xi32> to vector<8x128xf32>
    %cst = arith.constant dense<0.000000e+00> : vector<8x128xf32>
    %14 = tpu.matmul %13, %3, %cst {dimension_numbers = #tpu.dot_dimension_numbers<[1], [0], [0], [1], [0, 0, 1, 1], [], []>} : vector<8x128xf32>, vector<128x128xf32>, vector<8x128xf32> -> vector<8x128xf32>
    %c0_5 = arith.constant 0 : index
    %c0_6 = arith.constant 0 : index
    %15 = vector.load %arg6[%c0_5, %c0_6] : memref<8x128xf32, #tpu.memory_space<vmem>>, vector<8x128xf32>
    %16 = arith.addf %15, %14 : vector<8x128xf32>
    %c0_7 = arith.constant 0 : index
    %c0_8 = arith.constant 0 : index
    %17 = vector.load %arg6[%c0_7, %c0_8] : memref<8x128xf32, #tpu.memory_space<vmem>>, vector<8x128xf32>
    tpu.vector_store %arg6[%c0_7, %c0_8], %16 {strides = array<i32>} : memref<8x128xf32, #tpu.memory_space<vmem>>, vector<8x128xf32>,
    %c0_i32_9 = arith.constant 0 : i32
    %18 = arith.cmpi eq, %arg2, %c0_i32_9 : i32
    %19 = arith.extui %18 : i1 to i32
    %c0_i32_10 = arith.constant 0 : i32
    %20 = arith.cmpi ne, %19, %c0_i32_10 : i32
    scf.if %20 {
      %c0_11 = arith.constant 0 : index
      %c0_12 = arith.constant 0 : index
      %21 = vector.load %arg6[%c0_11, %c0_12] : memref<8x128xf32, #tpu.memory_space<vmem>>, vector<8x128xf32>
      %c0_13 = arith.constant 0 : index
      %c0_14 = arith.constant 0 : index
      %22 = vector.load %arg5[%c0_13, %c0_14] : memref<8x128xf32, #tpu.memory_space<vmem>>, vector<8x128xf32>
      tpu.vector_store %arg5[%c0_13, %c0_14], %21 {strides = array<i32>} : memref<8x128xf32, #tpu.memory_space<vmem>>, vector<8x128xf32>,
    } else {
    }
    return
  }
  func.func @transform_0(%arg0: i32, %arg1: i32, %arg2: i32) -> (i32, i32) {
    %c0_i32 = arith.constant 0 : i32
    %c0_i32_0 = arith.constant 0 : i32
    return %c0_i32, %arg2 : i32, i32
  }
  func.func @transform_1(%arg0: i32, %arg1: i32, %arg2: i32) -> (i32, i32) {
    %c0_i32 = arith.constant 0 : i32
    return %arg2, %arg1 : i32, i32
  }
  func.func @transform_2(%arg0: i32, %arg1: i32, %arg2: i32) -> (i32, i32) {
    %c0_i32 = arith.constant 0 : i32
    return %arg0, %arg1 : i32, i32
  }
}

</mosaic_0001>

<llo_original>
// kernel: tpu_custom_call.1
$region0: #{tpu_custom_call.1}
  #allocation0 [shape = 'u32[]', space=smem, size = 0x4, offset = 0x4, fixed_abs, tag = 'smem constant byte address 0x4 - core index']
  #allocation1 [shape = 'u32[72,128]{1,0:T(1,128)}', space=vmem, size = 0x9000, scoped, tag = 'internal scratch']
  #allocation2 [shape = 'f32[8,128]{1,0:T(8,128)}', space=vmem, size = 0x1000, scoped, tag = 'scratch operand']
  %s0 = inlined_call_operand.hbm [shape: s32[1,128], index: 0, kind: input, shape index: {}]
  %s1 = inlined_call_operand.hbm [shape: f32[128,128], index: 1, kind: input, shape index: {}]
  %s2 = inlined_call_operand.hbm [shape: f32[8,128], index: 2, kind: output, shape index: {}]
  %s3 = sld [smem:[#allocation0]]
  $region34: #{tpu_custom_call.1} parent=0
    _
  %s5 = ssub.s32 1, %s3
  %s6 = scalar_select 0, %s5, %s3
  $region1: #{tpu_custom_call.1} parent=0
    #allocation3 [shape = 'u8[512]{0}', space=vmem, size = 0x400, scoped, tag = 'input window, operand 0, single buffered']
    #allocation4 [shape = 's32[1]{0}', space=sflag, size = 0x4, scoped, tag = 'scoped memory for tpu_custom_call.1']
    #allocation5 [shape = 's32[1]{0}', space=sflag, size = 0x4, scoped, tag = 'scoped memory for tpu_custom_call.1']
    #allocation6 [shape = 'u8[65536]{0}', space=vmem, size = 0x10000, scoped, tag = 'input window, operand 1, single buffered']
    #allocation7 [shape = 's32[1]{0}', space=sflag, size = 0x4, scoped, tag = 'scoped memory for tpu_custom_call.1']
    #allocation8 [shape = 'u8[4096]{0}', space=vmem, size = 0x1000, scoped, tag = 'output window, operand 0, single buffered']
    %7 = vsyncpa [#allocation4], 0
    %8 = vsyncpa [#allocation7], 0
    %9 = vsyncpa [#allocation5], 0
    // Predicated region
    $region2: #{tpu_custom_call.1} parent=1 // pred_check
      _
    $region3: #{tpu_custom_call.1} parent=1 // pred_check_branch
      %11 = sbr.rel (0) target = $region5
    $region4: #{tpu_custom_call.1} parent=1 // pred_region
      %13 = vsyncadd [#allocation4], 0
      %s15 = sshll.u32 %s0, 4
      %s16 = int_to_ptr.hbm [resolvable:$true] %s15
      %s17 = sshll.u32 [#allocation3], 4
      %s18 = int_to_ptr.vmem [resolvable:$true] %s17
      %20 = dma.hbm_to_vmem [thread:$0]  %s16, 16, %s18, [#allocation4]
    $region5: #{tpu_custom_call.1} parent=1 // pred_fallthru
      _
    // Predicated region
    $region6: #{tpu_custom_call.1} parent=1 // pred_check
      _
    $region7: #{tpu_custom_call.1} parent=1 // pred_check_branch
      %22 = sbr.rel (0) target = $region9
    $region8: #{tpu_custom_call.1} parent=1 // pred_region
      %24 = vsyncadd [#allocation7], 0
      %s25 = sshll.u32 %s1, 4
      %s26 = int_to_ptr.hbm [resolvable:$true] %s25
      %s27 = sshll.u32 [#allocation6], 4
      %s28 = int_to_ptr.vmem [resolvable:$true] %s27
      %33 = dma.hbm_to_vmem [thread:$0]  %s26, 2048, %s28, [#allocation7], 128, 128, 8
    $region9: #{tpu_custom_call.1} parent=1 // pred_fallthru
      _
    // Predicated region
    $region10: #{tpu_custom_call.1} parent=1 // pred_check
      _
    $region11: #{tpu_custom_call.1} parent=1 // pred_check_branch
      %35 = sbr.rel (0) target = $region13
    $region12: #{tpu_custom_call.1} parent=1 // pred_region
      %37 = dma.done [#allocation4], 16
    $region13: #{tpu_custom_call.1} parent=1 // pred_fallthru
      _
    // Predicated region
    $region14: #{tpu_custom_call.1} parent=1 // pred_check
      _
    $region15: #{tpu_custom_call.1} parent=1 // pred_check_branch
      %39 = sbr.rel (0) target = $region17
    $region16: #{tpu_custom_call.1} parent=1 // pred_region
      %41 = dma.done [#allocation7], 2048
    $region17: #{tpu_custom_call.1} parent=1 // pred_fallthru
      _
    %p42 = scmp.eq.s32.totalorder 0, 0
    // Predicated region
    $region18: #{tpu_custom_call.1} parent=1 // pred_check
      %p43 = pneg %p42
    $region19: #{tpu_custom_call.1} parent=1 // pred_check_branch
      %45 = sbr.rel (%p43) target = $region21
    $region20: #{tpu_custom_call.1} parent=1 // pred_region
      %46 = vst [vmem:[#allocation2] sm:$0xff] 0.0
    $region21: #{tpu_custom_call.1} parent=1 // pred_fallthru
      _
    %v47 = vld [vmem:[#allocation6] sm:$0xff]
    %v48 = vld [vmem:[#allocation6 + $0x8] sm:$0xff]
    %v49 = vld [vmem:[#allocation6 + $0x10] sm:$0xff]
    %v50 = vld [vmem:[#allocation6 + $0x18] sm:$0xff]
    %v51 = vld [vmem:[#allocation6 + $0x20] sm:$0xff]
    %v52 = vld [vmem:[#allocation6 + $0x28] sm:$0xff]
    %v53 = vld [vmem:[#allocation6 + $0x30] sm:$0xff]
    %v54 = vld [vmem:[#allocation6 + $0x38] sm:$0xff]
    %v55 = vld [vmem:[#allocation6 + $0x40] sm:$0xff]
    %v56 = vld [vmem:[#allocation6 + $0x48] sm:$0xff]
    %v57 = vld [vmem:[#allocation6 + $0x50] sm:$0xff]
    %v58 = vld [vmem:[#allocation6 + $0x58] sm:$0xff]
    %v59 = vld [vmem:[#allocation6 + $0x60] sm:$0xff]
    %v60 = vld [vmem:[#allocation6 + $0x68] sm:$0xff]
    %v61 = vld [vmem:[#allocation6 + $0x70] sm:$0xff]
    %v62 = vld [vmem:[#allocation6 + $0x78] sm:$0xff]
    %v63 = vld [vmem:[#allocation3] sm:$0x1]
    %s64 = smul.u32 0, 8
    %v65 = vlaneseq
    %v66 = vshrl.u32 %v65, 7
    %v67 = vstv %s64
    %v68 = vsub.s32 %v63, %v67
    %v69 = vperm.slane %v68, 0
    %vm70 = vcmp.eq.s32.totalorder %v69, %v66
    %v71 = vsel %vm70, 1, 0
    %v72 = vcvt.s32.f32 %v71
    %73 = vmatpush.msra.mxu0 %v62
    %74 = vmatpush.msra.mxu0 %v61
    %75 = vmatpush.msra.mxu0 %v60
    %76 = vmatpush.msra.mxu0 %v59
    %77 = vmatpush.msra.mxu0 %v58
    %78 = vmatpush.msra.mxu0 %v57
    %79 = vmatpush.msra.mxu0 %v56
    %80 = vmatpush.msra.mxu0 %v55
    %81 = vmatpush.msra.mxu0 %v54
    %82 = vmatpush.msra.mxu0 %v53
    %83 = vmatpush.msra.mxu0 %v52
    %84 = vmatpush.msra.mxu0 %v51
    %85 = vmatpush.msra.mxu0 %v50
    %86 = vmatpush.msra.mxu0 %v49
    %87 = vmatpush.msra.mxu0 %v48
    %88 = vmatpush.msra.mxu0 %v47
    %89 = vmatmul.f32.gmra.mxu0 %v72
    %v90 = vpop.f32.mrf.mxu0
    %v91 = vadd.f32 0.0, %v90
    %92 = vdwg.mxu0
    %v93 = vld [vmem:[#allocation2] sm:$0xff]
    %v94 = vadd.f32 %v93, %v91
    %95 = vst [vmem:[#allocation2] sm:$0xff] %v94
    // Predicated region
    $region22: #{tpu_custom_call.1} parent=1 // pred_check
      %p96 = pneg %p42
    $region23: #{tpu_custom_call.1} parent=1 // pred_check_branch
      %98 = sbr.rel (%p96) target = $region25
    $region24: #{tpu_custom_call.1} parent=1 // pred_region
      %v99 = vld [vmem:[#allocation2] sm:$0xff]
      %100 = vst [vmem:[#allocation8] sm:$0xff] %v99
    $region25: #{tpu_custom_call.1} parent=1 // pred_fallthru
      _
    // Predicated region
    $region26: #{tpu_custom_call.1} parent=1 // pred_check
      _
    $region27: #{tpu_custom_call.1} parent=1 // pred_check_branch
      %102 = sbr.rel (0) target = $region29
    $region28: #{tpu_custom_call.1} parent=1 // pred_region
      %104 = vsyncadd [#allocation5], 0
      %s106 = sshll.u32 [#allocation8], 4
      %s107 = int_to_ptr.vmem [resolvable:$true] %s106
      %s108 = sshll.u32 %s2, 4
      %s109 = int_to_ptr.hbm [resolvable:$true] %s108
      %111 = dma.vmem_to_hbm [thread:$0]  %s107, 128, %s109, [#allocation5]
    $region29: #{tpu_custom_call.1} parent=1 // pred_fallthru
      _
    // Predicated region
    $region30: #{tpu_custom_call.1} parent=1 // pred_check
      _
    $region31: #{tpu_custom_call.1} parent=1 // pred_check_branch
      %113 = sbr.rel (0) target = $region33
    $region32: #{tpu_custom_call.1} parent=1 // pred_region
      %115 = dma.done [#allocation5], 128
    $region33: #{tpu_custom_call.1} parent=1 // pred_fallthru
      _
    %116 = vsyncpa [#allocation4], 1
    %117 = vsyncpa [#allocation7], 1
    %118 = vsyncpa [#allocation5], 1

</llo_original>
